<compile_context>
chip_gen: v7x
topology: tpu7x:2x2x1
jax: 0.10.0
libtpu: 0.0.40
codegen_flags: <defaults>
</compile_context>

<pallas_src>
import jax
import jax.numpy as jnp
from jax import lax
from jax.experimental import pallas as pl
from jax.experimental.pallas import tpu as pltpu


IN_FEATURES = 10
HIDDEN = 64
OUT_FEATURES = 1
K_PAD = 16      # in_features padded to a bf16 sublane-pack multiple (zeros, inert)
LANE = 128
MAX_TB = 2048   # cap per-step x slab; far below any VMEM limit, amortizes step overhead


def mlp_kernel(x_ref, w1t_ref, bw_ref, b2_ref, o_ref):
    # x_ref  : (TB, K_PAD)      f32   -- natural layout, cast to bf16 in-kernel
    # w1t_ref: (HIDDEN, K_PAD)  bf16  -- W1^T, VMEM-resident
    # bw_ref : (HIDDEN, 2)      f32   -- [:,0] = b1, [:,1] = w2 column (merged constant)
    # b2_ref : (1, 1)           f32   -- SMEM scalar
    # o_ref  : (1, TB)          f32   -- lane-dense output slab (batch on lanes)

    x_bf = x_ref[...].astype(jnp.bfloat16)                       # VPU cast, idle slots
    # Layer 1 on the MXU: contract K of W1^T (HIDDEN, K) with K of x (TB, K)
    # -> (HIDDEN, TB), batch on lanes, f32 accumulation.
    h = lax.dot_general(
        w1t_ref[...], x_bf,
        dimension_numbers=(((1,), (1,)), ((), ())),
        preferred_element_type=jnp.float32)

    b1c = bw_ref[:, 0:1]                                         # (HIDDEN, 1) static slice
    w2c = bw_ref[:, 1:2]                                         # (HIDDEN, 1) static slice

    # Bias + ReLU in f32 on the VPU (broadcast along lanes).
    h = jnp.maximum(h + b1c, 0.0)
    # Layer 2 (single output feature): VPU multiply + sublane reduction (XLU),
    # no second MXU round trip; result is already lane-dense (1, TB).
    out = jnp.sum(h * w2c, axis=0, keepdims=True) + b2_ref[0, 0]
    o_ref[...] = out.astype(o_ref.dtype)


def _choose_batch_tile(batch):
    """Adaptive batch tile: single step for small batches, wide tiles (but >= 2
    grid steps, for v7x's two TensorCores) for large batches."""
    b_ceil = pl.cdiv(batch, LANE) * LANE
    if b_ceil <= LANE:
        return LANE                       # one step; don't split a micro-batch across cores
    tb = min(MAX_TB, pl.cdiv(b_ceil // 2, LANE) * LANE)
    return max(tb, LANE)


def simple_mlp(x, w1, b1, w2, b2):
    batch, in_features = x.shape
    hidden = w1.shape[1]
    out_features = w2.shape[1]
    assert out_features == OUT_FEATURES == 1
    assert in_features <= K_PAD

    tb = _choose_batch_tile(batch)
    grid = (pl.cdiv(batch, tb),)

    # Wrapper-side prep (tiny, one-time for weights; only K is padded for x):
    #   * x: zero-pad K 10 -> 16 (must be explicit zeros: it enters the contraction).
    #     No batch padding, no transpose, no cast — handled in-kernel / by block bounds.
    #   * W1^T cast to bf16 (MXU operand), b1 & w2 merged into one f32 constant,
    #     b2 as an SMEM scalar.
    xk = jnp.pad(x, ((0, 0), (0, K_PAD - in_features)))                  # (batch, K_PAD) f32
    w1t = jnp.pad(w1, ((0, K_PAD - in_features), (0, 0))).T.astype(jnp.bfloat16)
    bw = jnp.concatenate(
        [b1.reshape(hidden, 1), w2.reshape(hidden, 1)], axis=1).astype(jnp.float32)
    b2s = b2.reshape(1, 1).astype(jnp.float32)

    out = pl.pallas_call(
        mlp_kernel,
        out_shape=jax.ShapeDtypeStruct((1, batch), jnp.float32),
        grid=grid,
        in_specs=[
            pl.BlockSpec((tb, K_PAD), lambda i: (i, 0)),       # x: tiled along batch
            pl.BlockSpec((hidden, K_PAD), lambda i: (0, 0)),   # W1^T: VMEM-resident
            pl.BlockSpec((hidden, 2), lambda i: (0, 0)),       # [b1 | w2]: VMEM-resident
            pl.BlockSpec(memory_space=pltpu.SMEM),             # b2: SMEM scalar
        ],
        out_specs=pl.BlockSpec((1, tb), lambda i: (0, i)),
        compiler_params=pltpu.CompilerParams(
            dimension_semantics=("parallel",)),
    )(xk, w1t, bw, b2s)

    # Restore the (batch, 1) PyTorch output layout.
    return out.reshape(batch, out_features)


def init_params(key, in_features=IN_FEATURES, hidden=HIDDEN, out_features=OUT_FEATURES):
    # Deterministic init mimicking PyTorch nn.Linear default:
    # U(-1/sqrt(fan_in), 1/sqrt(fan_in)) for weights and biases.
    k1, k2, k3, k4 = jax.random.split(key, 4)
    bound1 = 1.0 / jnp.sqrt(in_features)
    bound2 = 1.0 / jnp.sqrt(hidden)
    w1 = jax.random.uniform(k1, (in_features, hidden), jnp.float32, -bound1, bound1)
    b1 = jax.random.uniform(k2, (hidden,), jnp.float32, -bound1, bound1)
    w2 = jax.random.uniform(k3, (hidden, out_features), jnp.float32, -bound2, bound2)
    b2 = jax.random.uniform(k4, (out_features,), jnp.float32, -bound2, bound2)
    return w1, b1, w2, b2


if __name__ == "__main__":
    key = jax.random.PRNGKey(0)
    kx, kp = jax.random.split(key)

    x = jax.random.normal(kx, (32, IN_FEATURES), dtype=jnp.float32)
    w1, b1, w2, b2 = init_params(kp)

    out = simple_mlp(x, w1, b1, w2, b2)
    jax.block_until_ready(out)

    # Reference with the same bf16-rounded MXU operands, f32 math at highest precision.
    # (Note: x/W1 are bf16-rounded on the MXU, so exact-f32 PyTorch parity is ~1e-3.)
    xr = x.astype(jnp.bfloat16).astype(jnp.float32)
    w1r = w1.astype(jnp.bfloat16).astype(jnp.float32)
    h_ref = jnp.maximum(
        jnp.dot(xr, w1r, precision=jax.lax.Precision.HIGHEST) + b1[None, :], 0.0)
    ref = jnp.dot(h_ref, w2, precision=jax.lax.Precision.HIGHEST) + b2[None, :]

    assert out.shape == (32, 1), out.shape
    assert jnp.allclose(out, ref, atol=1e-4, rtol=1e-4), float(jnp.max(jnp.abs(out - ref)))

    print("KERNEL_OK")
</pallas_src>

<mosaic_0001>
module attributes {stable_mosaic.version = 11 : i64} {
  func.func @mlp_kernel(%arg0: i32, %arg1: memref<128x16xf32, #tpu.memory_space<vmem>>, %arg2: memref<64x16xbf16, #tpu.memory_space<vmem>>, %arg3: memref<64x2xf32, #tpu.memory_space<vmem>>, %arg4: memref<1x1xf32, #tpu.memory_space<smem>>, %arg5: memref<1x128xf32, #tpu.memory_space<vmem>>) attributes {dimension_semantics = [#tpu.dimension_semantics<parallel>], iteration_bounds = array<i64: 1>, scalar_prefetch = 0 : i64, scratch_operands = 0 : i64, tpu.core_type = #tpu.core_type<tc>, window_params = [{transform_indices = @transform_0, window_bounds = array<i64: 128, 16>}, {pipeline_mode = #tpu.pipeline_mode<synchronous>, transform_indices = @transform_1, window_bounds = array<i64: 64, 16>}, {pipeline_mode = #tpu.pipeline_mode<synchronous>, transform_indices = @transform_2, window_bounds = array<i64: 64, 2>}, {transform_indices = @transform_3, window_bounds = array<i64: 1, 1>}, {transform_indices = @transform_4, window_bounds = array<i64: 1, 128>}]} {
    %c0 = arith.constant 0 : index
    %c0_0 = arith.constant 0 : index
    %0 = vector.load %arg1[%c0, %c0_0] : memref<128x16xf32, #tpu.memory_space<vmem>>, vector<128x16xf32>
    %1 = arith.truncf %0 : vector<128x16xf32> to vector<128x16xbf16>
    %c0_1 = arith.constant 0 : index
    %c0_2 = arith.constant 0 : index
    %2 = vector.load %arg2[%c0_1, %c0_2] : memref<64x16xbf16, #tpu.memory_space<vmem>>, vector<64x16xbf16>
    %cst = arith.constant dense<0.000000e+00> : vector<64x128xf32>
    %3 = tpu.matmul %2, %1, %cst {dimension_numbers = #tpu.dot_dimension_numbers<[1], [1], [0], [0], [0, 0, 1, 0], [], []>} : vector<64x16xbf16>, vector<128x16xbf16>, vector<64x128xf32> -> vector<64x128xf32>
    %c0_3 = arith.constant 0 : index
    %c0_4 = arith.constant 0 : index
    %4 = vector.load %arg3[%c0_3, %c0_4] : memref<64x2xf32, #tpu.memory_space<vmem>>, vector<64x1xf32>
    %c0_5 = arith.constant 0 : index
    %c1 = arith.constant 1 : index
    %5 = vector.load %arg3[%c0_5, %c1] : memref<64x2xf32, #tpu.memory_space<vmem>>, vector<64x1xf32>
    %6 = vector.broadcast %4 : vector<64x1xf32> to vector<64x128xf32>
    %7 = arith.addf %3, %6 : vector<64x128xf32>
    %cst_6 = arith.constant 0.000000e+00 : f32
    %8 = vector.broadcast %cst_6 : f32 to vector<64x128xf32>
    %9 = arith.maximumf %7, %8 : vector<64x128xf32>
    %10 = vector.broadcast %5 : vector<64x1xf32> to vector<64x128xf32>
    %11 = arith.mulf %9, %10 : vector<64x128xf32>
    %cst_7 = arith.constant dense<0.000000e+00> : vector<128xf32>
    %12 = vector.multi_reduction <add>, %11, %cst_7 [0] : vector<64x128xf32> to vector<128xf32>
    %13 = vector.shape_cast %12 : vector<128xf32> to vector<1x128xf32>
    %c0_8 = arith.constant 0 : index
    %c0_9 = arith.constant 0 : index
    %14 = memref.load %arg4[%c0_8, %c0_9] : memref<1x1xf32, #tpu.memory_space<smem>>
    %15 = vector.broadcast %14 : f32 to vector<1x128xf32>
    %16 = arith.addf %13, %15 : vector<1x128xf32>
    %c0_10 = arith.constant 0 : index
    %c0_11 = arith.constant 0 : index
    %17 = vector.load %arg5[%c0_10, %c0_11] : memref<1x128xf32, #tpu.memory_space<vmem>>, vector<1x128xf32>
    tpu.vector_store %arg5[%c0_10, %c0_11], %16 {strides = array<i32>} : memref<1x128xf32, #tpu.memory_space<vmem>>, vector<1x128xf32>,
    return
  }
  func.func @transform_0(%arg0: i32) -> (i32, i32) {
    %c0_i32 = arith.constant 0 : i32
    %c0_i32_0 = arith.constant 0 : i32
    return %arg0, %c0_i32 : i32, i32
  }
  func.func @transform_1(%arg0: i32) -> (i32, i32) {
    %c0_i32 = arith.constant 0 : i32
    %c0_i32_0 = arith.constant 0 : i32
    %c0_i32_1 = arith.constant 0 : i32
    return %c0_i32, %c0_i32_0 : i32, i32
  }
  func.func @transform_2(%arg0: i32) -> (i32, i32) {
    %c0_i32 = arith.constant 0 : i32
    %c0_i32_0 = arith.constant 0 : i32
    %c0_i32_1 = arith.constant 0 : i32
    return %c0_i32, %c0_i32_0 : i32, i32
  }
  func.func @transform_3(%arg0: i32) -> (i32, i32) {
    %c0_i32 = arith.constant 0 : i32
    %c0_i32_0 = arith.constant 0 : i32
    %c0_i32_1 = arith.constant 0 : i32
    return %c0_i32, %c0_i32_0 : i32, i32
  }
  func.func @transform_4(%arg0: i32) -> (i32, i32) {
    %c0_i32 = arith.constant 0 : i32
    %c0_i32_0 = arith.constant 0 : i32
    return %c0_i32, %arg0 : i32, i32
  }
}

</mosaic_0001>

<llo_original>
// kernel: tpu_custom_call.1
$region0: #{tpu_custom_call.1}
  #allocation0 [shape = 'u32[]', space=smem, size = 0x4, offset = 0x4, fixed_abs, tag = 'smem constant byte address 0x4 - core index']
  #allocation1 [shape = 'u32[144,128]{1,0:T(1,128)}', space=vmem, size = 0x12000, scoped, tag = 'internal scratch']
  #allocation2 [shape = 'f32[1,1]{1,0:T(1,128)S(6)}', space=smem, size = 0x200, scoped, tag = 'scoped memory for tpu_custom_call.1']
  %s0 = inlined_call_operand.vmem [shape: f32[32,16], index: 0, kind: input, shape index: {}]
  %s1 = inlined_call_operand.vmem [shape: bf16[64,16], index: 1, kind: input, shape index: {}]
  %s2 = inlined_call_operand.vmem [shape: f32[64,2], index: 2, kind: input, shape index: {}]
  %s3 = inlined_call_operand.<no memory space> [shape: f32[1,1], index: 3, kind: input, shape index: {}]
  %s4 = inlined_call_operand.hbm [shape: f32[1,32], index: 4, kind: output, shape index: {}]
  %s5 = sld [smem:[#allocation0]]
  $region26: #{tpu_custom_call.1} parent=0
    _
  %s7 = ssub.s32 1, %s5
  %s8 = scalar_select 0, %s7, %s5
  %9 = sst [smem:[#allocation2]] %s3
  $region1: #{tpu_custom_call.1} parent=0
    #allocation3 [shape = 'u8[512]{0}', space=vmem, size = 0x400, scoped, tag = 'output window, operand 0, single buffered']
    #allocation4 [shape = 's32[1]{0}', space=sflag, size = 0x4, scoped, tag = 'scoped memory for tpu_custom_call.1']
    %10 = vsyncpa [#allocation4], 0
    // Predicated region
    $region2: #{tpu_custom_call.1} parent=1 // pred_check
      _
    $region3: #{tpu_custom_call.1} parent=1 // pred_check_branch
      %12 = sbr.rel (0) target = $region5
    $region4: #{tpu_custom_call.1} parent=1 // pred_region
      _
    $region5: #{tpu_custom_call.1} parent=1 // pred_fallthru
      _
    // Predicated region
    $region6: #{tpu_custom_call.1} parent=1 // pred_check
      _
    $region7: #{tpu_custom_call.1} parent=1 // pred_check_branch
      %14 = sbr.rel (0) target = $region9
    $region8: #{tpu_custom_call.1} parent=1 // pred_region
      _
    $region9: #{tpu_custom_call.1} parent=1 // pred_fallthru
      _
    // Predicated region
    $region10: #{tpu_custom_call.1} parent=1 // pred_check
      _
    $region11: #{tpu_custom_call.1} parent=1 // pred_check_branch
      %16 = sbr.rel (0) target = $region13
    $region12: #{tpu_custom_call.1} parent=1 // pred_region
      _
    $region13: #{tpu_custom_call.1} parent=1 // pred_fallthru
      _
    // Predicated region
    $region14: #{tpu_custom_call.1} parent=1 // pred_check
      _
    $region15: #{tpu_custom_call.1} parent=1 // pred_check_branch
      %18 = sbr.rel (0) target = $region17
    $region16: #{tpu_custom_call.1} parent=1 // pred_region
      _
    $region17: #{tpu_custom_call.1} parent=1 // pred_fallthru
      _
    %v20 = vld [vmem:[%s0] sm:$0xff]
    %v21 = vld [vmem:[%s0 + $0x8] sm:$0xff]
    %v22 = vld [vmem:[%s0 + $0x10] sm:$0xff]
    %v23 = vld [vmem:[%s0 + $0x18] sm:$0xff]
    %v24 = vld [vmem:[%s0 + $0x20] sm:$0xff]
    %v25 = vld [vmem:[%s0 + $0x28] sm:$0xff]
    %v26 = vld [vmem:[%s0 + $0x30] sm:$0xff]
    %v27 = vld [vmem:[%s0 + $0x38] sm:$0xff]
    %v28 = vld [vmem:[%s0 + $0x40] sm:$0xff]
    %v29 = vld [vmem:[%s0 + $0x48] sm:$0xff]
    %v30 = vld [vmem:[%s0 + $0x50] sm:$0xff]
    %v31 = vld [vmem:[%s0 + $0x58] sm:$0xff]
    %v32 = vld [vmem:[%s0 + $0x60] sm:$0xff]
    %v33 = vld [vmem:[%s0 + $0x68] sm:$0xff]
    %v34 = vld [vmem:[%s0 + $0x70] sm:$0xff]
    %v35 = vld [vmem:[%s0 + $0x78] sm:$0xff]
    %v36 = vpack.c.bf16 %v21, %v20
    %v37 = vpack.c.bf16 %v23, %v22
    %v38 = vpack.c.bf16 %v25, %v24
    %v39 = vpack.c.bf16 %v27, %v26
    %v40 = vpack.c.bf16 %v29, %v28
    %v41 = vpack.c.bf16 %v31, %v30
    %v42 = vpack.c.bf16 %v33, %v32
    %v43 = vpack.c.bf16 %v35, %v34
    %v44 = vld [vmem:[%s1] sm:$0xf]
    %v45 = vld [vmem:[%s1 + $0x4] sm:$0xf]
    %v46 = vld [vmem:[%s1 + $0x8] sm:$0xf]
    %v47 = vld [vmem:[%s1 + $0xc] sm:$0xf]
    %v48 = vld [vmem:[%s1 + $0x10] sm:$0xf]
    %v49 = vld [vmem:[%s1 + $0x14] sm:$0xf]
    %v50 = vld [vmem:[%s1 + $0x18] sm:$0xf]
    %v51 = vld [vmem:[%s1 + $0x1c] sm:$0xf]
    %v52 = vld [vmem:[%s2] sm:$0xff]
    %v53 = vld [vmem:[%s2 + $0x8] sm:$0xff]
    %v54 = vld [vmem:[%s2 + $0x10] sm:$0xff]
    %v55 = vld [vmem:[%s2 + $0x18] sm:$0xff]
    %v56 = vld [vmem:[%s2 + $0x20] sm:$0xff]
    %v57 = vld [vmem:[%s2 + $0x28] sm:$0xff]
    %v58 = vld [vmem:[%s2 + $0x30] sm:$0xff]
    %v59 = vld [vmem:[%s2 + $0x38] sm:$0xff]
    %61 = vset.pattern.permute.xlu0 0
    %62 = vperm.xlu0 %61, %v52
    %v63 = vpop.permute.xlu0 %62
    %66 = vset.pattern.permute.xlu0 0
    %67 = vperm.xlu0 %66, %v53
    %v68 = vpop.permute.xlu0 %67
    %71 = vset.pattern.permute.xlu0 0
    %72 = vperm.xlu0 %71, %v54
    %v73 = vpop.permute.xlu0 %72
    %76 = vset.pattern.permute.xlu0 0
    %77 = vperm.xlu0 %76, %v55
    %v78 = vpop.permute.xlu0 %77
    %81 = vset.pattern.permute.xlu0 0
    %82 = vperm.xlu0 %81, %v56
    %v83 = vpop.permute.xlu0 %82
    %86 = vset.pattern.permute.xlu0 0
    %87 = vperm.xlu0 %86, %v57
    %v88 = vpop.permute.xlu0 %87
    %91 = vset.pattern.permute.xlu0 0
    %92 = vperm.xlu0 %91, %v58
    %v93 = vpop.permute.xlu0 %92
    %96 = vset.pattern.permute.xlu0 0
    %97 = vperm.xlu0 %96, %v59
    %v98 = vpop.permute.xlu0 %97
    %v108 = vunpack.c.l.b16 %v44
    %v109 = vunpack.c.l.b16 %v45
    %v110 = vunpack.c.l.b16 %v46
    %v111 = vunpack.c.l.b16 %v47
    %v112 = vunpack.c.l.b16 %v48
    %v113 = vunpack.c.l.b16 %v49
    %v114 = vunpack.c.l.b16 %v50
    %v115 = vunpack.c.l.b16 %v51
    %v116 = vpack.c.b16 %v109, %v108
    %v117 = vpack.c.b16 %v111, %v110
    %v118 = vpack.c.b16 %v113, %v112
    %v119 = vpack.c.b16 %v115, %v114
    %vm120 = vcmask 130048
    %v122 = vsel %vm120, %v116, 0
    %v125 = vsel %vm120, %v117, 0
    %v128 = vsel %vm120, %v118, 0
    %v131 = vsel %vm120, %v119, 0
    %v134 = vsel %vm120, %v36, 0
    %v137 = vsel %vm120, %v37, 0
    %v140 = vsel %vm120, %v38, 0
    %v143 = vsel %vm120, %v39, 0
    %v146 = vsel %vm120, %v40, 0
    %v149 = vsel %vm120, %v41, 0
    %v152 = vsel %vm120, %v42, 0
    %v155 = vsel %vm120, %v43, 0
    %157 = vmatprep.subr.bf16.mxu0 0
    %158 = vmatpush1.bf16.xpose.msra.mxu0 %v134
    %159 = vmatprep.subr.bf16.mxu0 0
    %160 = vmatpush1.bf16.xpose.msra.mxu0 %v137
    %161 = vmatprep.subr.bf16.mxu0 0
    %162 = vmatpush1.bf16.xpose.msra.mxu0 %v140
    %163 = vmatprep.subr.bf16.mxu0 0
    %164 = vmatpush1.bf16.xpose.msra.mxu0 %v143
    %165 = vmatprep.subr.bf16.mxu0 0
    %166 = vmatpush1.bf16.xpose.msra.mxu0 %v146
    %167 = vmatprep.subr.bf16.mxu0 0
    %168 = vmatpush1.bf16.xpose.msra.mxu0 %v149
    %169 = vmatprep.subr.bf16.mxu0 0
    %170 = vmatpush1.bf16.xpose.msra.mxu0 %v152
    %171 = vmatprep.subr.bf16.mxu0 0
    %172 = vmatpush1.bf16.xpose.msra.mxu0 %v155
    %173 = vmatprep.subr.bf16.mxu0 0
    %174 = vmatpush1.bf16.xpose.msra.mxu0 0
    %175 = vmatprep.subr.bf16.mxu0 0
    %176 = vmatpush1.bf16.xpose.msra.mxu0 0
    %177 = vmatprep.subr.bf16.mxu0 0
    %178 = vmatpush1.bf16.xpose.msra.mxu0 0
    %179 = vmatprep.subr.bf16.mxu0 0
    %180 = vmatpush1.bf16.xpose.msra.mxu0 0
    %181 = vmatprep.subr.bf16.mxu0 0
    %182 = vmatpush1.bf16.xpose.msra.mxu0 0
    %183 = vmatprep.subr.bf16.mxu0 0
    %184 = vmatpush1.bf16.xpose.msra.mxu0 0
    %185 = vmatprep.subr.bf16.mxu0 0
    %186 = vmatpush1.bf16.xpose.msra.mxu0 0
    %187 = vmatprep.subr.bf16.mxu0 0
    %188 = vmatpush1.bf16.xpose.msra.mxu0 0
    %189 = vmatprep.mubr.bf16.mxu0 0
    %190 = vmatmul.mubr.bf16.gmra.mrb[0].mxu0 %v122
    %v191 = vpop.f32.mrb[0].mxu0
    %v192 = vadd.f32 %v63, %v191
    %v193 = vpop.f32.mrb[0].mxu0
    %v194 = vpop.f32.mrb[0].mxu0
    %v195 = vadd.f32 %v68, %v194
    %v196 = vpop.f32.mrb[0].mxu0
    %197 = vmatprep.mubr.bf16.mxu0 0
    %198 = vmatmul.mubr.bf16.gmra.mrb[0].mxu0 %v125
    %v199 = vpop.f32.mrb[0].mxu0
    %v200 = vadd.f32 %v73, %v199
    %v201 = vpop.f32.mrb[0].mxu0
    %v202 = vpop.f32.mrb[0].mxu0
    %v203 = vadd.f32 %v78, %v202
    %v204 = vpop.f32.mrb[0].mxu0
    %205 = vmatprep.mubr.bf16.mxu0 0
    %206 = vmatmul.mubr.bf16.gmra.mrb[0].mxu0 %v128
    %v207 = vpop.f32.mrb[0].mxu0
    %v208 = vadd.f32 %v83, %v207
    %v209 = vpop.f32.mrb[0].mxu0
    %v210 = vpop.f32.mrb[0].mxu0
    %v211 = vadd.f32 %v88, %v210
    %v212 = vpop.f32.mrb[0].mxu0
    %213 = vmatprep.mubr.bf16.mxu0 0
    %214 = vmatmul.mubr.bf16.gmra.mrb[0].mxu0 %v131
    %v215 = vpop.f32.mrb[0].mxu0
    %v216 = vadd.f32 %v93, %v215
    %v217 = vpop.f32.mrb[0].mxu0
    %v218 = vpop.f32.mrb[0].mxu0
    %v219 = vadd.f32 %v98, %v218
    %v220 = vpop.f32.mrb[0].mxu0
    %221 = vdwg.mxu0
    %v222 = vmax.f32 %v192, 0.0
    %v223 = vmax.f32 %v195, 0.0
    %v224 = vmax.f32 %v200, 0.0
    %v225 = vmax.f32 %v203, 0.0
    %v226 = vmax.f32 %v208, 0.0
    %v227 = vmax.f32 %v211, 0.0
    %v228 = vmax.f32 %v216, 0.0
    %v229 = vmax.f32 %v219, 0.0
    %230 = vset.pattern.permute.xlu0 1
    %231 = vperm.xlu0 %230, %v52
    %v232 = vpop.permute.xlu0 %231
    %234 = vset.pattern.permute.xlu0 1
    %235 = vperm.xlu0 %234, %v53
    %v236 = vpop.permute.xlu0 %235
    %238 = vset.pattern.permute.xlu0 1
    %239 = vperm.xlu0 %238, %v54
    %v240 = vpop.permute.xlu0 %239
    %242 = vset.pattern.permute.xlu0 1
    %243 = vperm.xlu0 %242, %v55
    %v244 = vpop.permute.xlu0 %243
    %246 = vset.pattern.permute.xlu0 1
    %247 = vperm.xlu0 %246, %v56
    %v248 = vpop.permute.xlu0 %247
    %250 = vset.pattern.permute.xlu0 1
    %251 = vperm.xlu0 %250, %v57
    %v252 = vpop.permute.xlu0 %251
    %254 = vset.pattern.permute.xlu0 1
    %255 = vperm.xlu0 %254, %v58
    %v256 = vpop.permute.xlu0 %255
    %258 = vset.pattern.permute.xlu0 1
    %259 = vperm.xlu0 %258, %v59
    %v260 = vpop.permute.xlu0 %259
    %v262 = vmul.f32 %v222, %v232
    %v263 = vmul.f32 %v223, %v236
    %v264 = vmul.f32 %v224, %v240
    %v265 = vmul.f32 %v225, %v244
    %v266 = vmul.f32 %v226, %v248
    %v267 = vmul.f32 %v227, %v252
    %v268 = vmul.f32 %v228, %v256
    %v269 = vmul.f32 %v229, %v260
    %v270 = vadd.f32 %v262, %v263
    %v271 = vadd.f32 %v270, %v264
    %v272 = vadd.f32 %v271, %v265
    %v273 = vadd.f32 %v272, %v266
    %v274 = vadd.f32 %v273, %v267
    %v275 = vadd.f32 %v274, %v268
    %v276 = vadd.f32 %v275, %v269
    %v277 = vrot.slane %v276, 4
    %v278 = vadd.f32 %v276, %v277
    %v279 = vrot.slane %v278, 2
    %v280 = vadd.f32 %v278, %v279
    %v281 = vrot.slane %v280, 1
    %v282 = vadd.f32 %v280, %v281
    %s283 = sld [smem:[#allocation2]]
    %v284 = vstv %s283
    %v285 = vadd.f32 %v282, %v284
    %286 = vst [vmem:[#allocation3] sm:$0x1] %v285
    // Predicated region
    $region18: #{tpu_custom_call.1} parent=1 // pred_check
      _
    $region19: #{tpu_custom_call.1} parent=1 // pred_check_branch
      %288 = sbr.rel (0) target = $region21
    $region20: #{tpu_custom_call.1} parent=1 // pred_region
      %s290 = ssub.s32 16, 16
      %291 = vsyncadd [#allocation4], %s290
      %s293 = sshll.u32 [#allocation3], 4
      %s294 = int_to_ptr.vmem [resolvable:$true] %s293
      %296 = dma.vmem_to_hbm [thread:$0]  %s294, 16, %s4, [#allocation4]
    $region21: #{tpu_custom_call.1} parent=1 // pred_fallthru
      _
    // Predicated region
    $region22: #{tpu_custom_call.1} parent=1 // pred_check
      _
    $region23: #{tpu_custom_call.1} parent=1 // pred_check_branch
      %298 = sbr.rel (0) target = $region25
    $region24: #{tpu_custom_call.1} parent=1 // pred_region
      %299 = dma.done [#allocation4], 16
    $region25: #{tpu_custom_call.1} parent=1 // pred_fallthru
      _
    %300 = vsyncpa [#allocation4], 1

</llo_original>
